<compile_context>
chip_gen: v5e
topology: v5e:2x2
jax: 0.10.0
libtpu: 0.0.40
codegen_flags: <defaults>
</compile_context>

<pallas_src>
import functools

import jax
import jax.numpy as jnp
from jax import lax
from jax.experimental import pallas as pl
from jax.experimental.pallas import tpu as pltpu


def _round_up(x, m):
    return ((x + m - 1) // m) * m


# ---------------------------------------------------------------------------
# Kernels
# ---------------------------------------------------------------------------
def _classifier_kernel_single_k(x_ref, w_ref, b_ref, o_ref, *,
                                activation, mxu_dtype):
    # x_ref: (tb, K)  w_ref: (tn, K)  b_ref: (1, tn)  o_ref: (tb, tn)
    # Whole reduction in one step: no scratch, no pl.when, direct store.
    x = x_ref[...]
    w = w_ref[...]
    if mxu_dtype is not None:                 # optional bf16 MXU feed
        x = x.astype(mxu_dtype)
        w = w.astype(mxu_dtype)

    out = lax.dot_general(
        x, w,
        dimension_numbers=(((1,), (1,)), ((), ())),   # x @ W^T
        preferred_element_type=jnp.float32)
    out = out + b_ref[...].astype(jnp.float32)
    if activation is not None:
        out = activation(out)
    o_ref[...] = out.astype(o_ref.dtype)


def _classifier_kernel_multi_k(x_ref, w_ref, b_ref, o_ref, acc_ref, *,
                               activation, mxu_dtype):
    # x_ref: (tb, tk)  w_ref: (tn, tk)  b_ref: (1, tn)  o_ref: (tb, tn)
    k = pl.program_id(2)

    @pl.when(k == 0)
    def _():
        acc_ref[...] = jnp.zeros_like(acc_ref)

    x = x_ref[...]
    w = w_ref[...]
    if mxu_dtype is not None:
        x = x.astype(mxu_dtype)
        w = w.astype(mxu_dtype)

    acc_ref[...] += lax.dot_general(
        x, w,
        dimension_numbers=(((1,), (1,)), ((), ())),   # x @ W^T
        preferred_element_type=jnp.float32)

    @pl.when(k == pl.num_programs(2) - 1)
    def _():
        out = acc_ref[...] + b_ref[...].astype(jnp.float32)
        if activation is not None:
            out = activation(out)
        o_ref[...] = out.astype(o_ref.dtype)


# ---------------------------------------------------------------------------
# Wrapper
# ---------------------------------------------------------------------------
def classifier_forward(x, weight, bias, *, activation=None,
                       block_b=None, block_n=None, block_k=None,
                       mxu_dtype=None):
    """Pallas equivalent of Classifier.forward (dropout p=0.0).

    Args:
      x:       (B, D_in)      input activations.
      weight:  (D_out, D_in)  torch.nn.Linear.weight layout (NOT transposed).
      bias:    (D_out,)       torch.nn.Linear.bias layout.
      activation: optional elementwise jnp function (e.g. jnp.tanh) or None.
      block_b/block_n/block_k: optional tile overrides.
      mxu_dtype: optional dtype (e.g. jnp.bfloat16) to feed the MXU on
                 v6e/v7x; accumulation stays f32. None keeps exact f32.
    """
    B, D_in = x.shape
    D_out, D_in_w = weight.shape
    assert D_in == D_in_w, (D_in, D_in_w)
    assert bias.shape == (D_out,), bias.shape

    # ---- tile selection (multiples of (8, 128); biggest that fits VMEM) ---
    if block_b is None:
        block_b = min(512, _round_up(B, 8))
    if block_n is None:
        block_n = min(512, _round_up(D_out, 128))
    if block_k is None:
        block_k = min(512, _round_up(D_in, 128))

    Bp = _round_up(B, block_b)
    Np = _round_up(D_out, block_n)
    Kp = _round_up(D_in, block_k)

    # ---- pad to tile multiples (zero padding is exact for the matmul) -----
    if (Bp, Kp) != (B, D_in):
        x = jnp.pad(x, ((0, Bp - B), (0, Kp - D_in)))
    if (Np, Kp) != (D_out, D_in):
        weight = jnp.pad(weight, ((0, Np - D_out), (0, Kp - D_in)))
    if Np != D_out:
        bias = jnp.pad(bias, (0, Np - D_out))
    b2d = bias.reshape(1, Np)

    n_k = Kp // block_k
    in_itm = x.dtype.itemsize
    out_itm = x.dtype.itemsize

    # Per-step VMEM footprint (double-buffered ins/outs + f32 accumulator).
    vmem_bytes = (2 * (block_b * block_k + block_n * block_k + block_n) * in_itm
                  + 2 * block_b * block_n * out_itm
                  + block_b * block_n * 4)
    vmem_limit = int(min(max(2 * vmem_bytes, 8 << 20), 48 << 20))

    cost = pl.CostEstimate(
        flops=2 * Bp * Kp * Np,
        transcendentals=0,
        bytes_accessed=(Bp * Kp * in_itm + Np * Kp * in_itm
                        + Np * in_itm + Bp * Np * out_itm))

    if n_k == 1:
        # ----- fused single-reduction-step path (no scratch) ---------------
        kernel = functools.partial(
            _classifier_kernel_single_k,
            activation=activation, mxu_dtype=mxu_dtype)
        grid = (Np // block_n, Bp // block_b)
        out_padded = pl.pallas_call(
            kernel,
            out_shape=jax.ShapeDtypeStruct((Bp, Np), x.dtype),
            grid_spec=pltpu.PrefetchScalarGridSpec(
                num_scalar_prefetch=0,
                grid=grid,
                in_specs=[
                    pl.BlockSpec((block_b, block_k), lambda n, b: (b, 0)),  # x
                    pl.BlockSpec((block_n, block_k), lambda n, b: (n, 0)),  # W
                    pl.BlockSpec((1, block_n), lambda n, b: (0, n)),        # bias
                ],
                out_specs=pl.BlockSpec((block_b, block_n), lambda n, b: (b, n)),
            ),
            compiler_params=pltpu.CompilerParams(
                dimension_semantics=("parallel", "parallel"),
                vmem_limit_bytes=vmem_limit,
            ),
            cost_estimate=cost,
        )(x, weight, b2d)
    else:
        # ----- tiled reduction path with f32 VMEM accumulator --------------
        kernel = functools.partial(
            _classifier_kernel_multi_k,
            activation=activation, mxu_dtype=mxu_dtype)
        grid = (Np // block_n, Bp // block_b, n_k)   # k last = "arbitrary"
        out_padded = pl.pallas_call(
            kernel,
            out_shape=jax.ShapeDtypeStruct((Bp, Np), x.dtype),
            grid_spec=pltpu.PrefetchScalarGridSpec(
                num_scalar_prefetch=0,
                grid=grid,
                in_specs=[
                    pl.BlockSpec((block_b, block_k), lambda n, b, k: (b, k)),  # x
                    pl.BlockSpec((block_n, block_k), lambda n, b, k: (n, k)),  # W
                    pl.BlockSpec((1, block_n), lambda n, b, k: (0, n)),        # bias
                ],
                out_specs=pl.BlockSpec((block_b, block_n),
                                       lambda n, b, k: (b, n)),
                scratch_shapes=[pltpu.VMEM((block_b, block_n), jnp.float32)],
            ),
            compiler_params=pltpu.CompilerParams(
                dimension_semantics=("parallel", "parallel", "arbitrary"),
                vmem_limit_bytes=vmem_limit,
            ),
            cost_estimate=cost,
        )(x, weight, b2d)

    if (Bp, Np) != (B, D_out):
        out_padded = out_padded[:B, :D_out]
    return out_padded


def classifier_reference(x, weight, bias, activation=None):
    # Pure-JAX reference matching torch semantics: y = x @ W^T + b
    out = x @ weight.T + bias
    if activation is not None:
        out = activation(out)
    return out


def _make_inputs(key, batch, input_size, output_size):
    kx, kw, kb = jax.random.split(key, 3)
    x = jax.random.normal(kx, (batch, input_size), dtype=jnp.float32)
    bound = 1.0 / (input_size ** 0.5)   # nn.Linear-style uniform init
    weight = jax.random.uniform(
        kw, (output_size, input_size), minval=-bound, maxval=bound,
        dtype=jnp.float32)
    bias = jax.random.uniform(
        kb, (output_size,), minval=-bound, maxval=bound, dtype=jnp.float32)
    return x, weight, bias


if __name__ == "__main__":
    key = jax.random.PRNGKey(0)
    k1, k2 = jax.random.split(key)

    # TODO(synk): dropout_rate > 0 (training mode) would need pltpu.prng_* in
    # the kernel; with the module default p=0.0 it is exactly the identity.

    # --- 1) Module-default small config (single-k fused path) --------------
    x, weight, bias = _make_inputs(k1, batch=8, input_size=32, output_size=16)
    out = classifier_forward(x, weight, bias, activation=None)
    out = jax.block_until_ready(out)
    ref = classifier_reference(x, weight, bias, activation=None)
    assert out.shape == (8, 16)
    assert jnp.allclose(out, ref, atol=1e-5, rtol=1e-5), \
        "mismatch vs reference (small)"

    # --- 2) Multi-tile config exercising the (n, b, k) grid + accumulator --
    x2, w2, b2 = _make_inputs(k2, batch=32, input_size=384, output_size=512)
    out2 = classifier_forward(
        x2, w2, b2, activation=jnp.tanh,
        block_b=16, block_n=256, block_k=128)   # grid = (2, 2, 3)
    out2 = jax.block_until_ready(out2)
    ref2 = classifier_reference(x2, w2, b2, activation=jnp.tanh)
    assert out2.shape == (32, 512)
    assert jnp.allclose(out2, ref2, atol=1e-4, rtol=1e-4), \
        "mismatch vs reference (tiled)"

    print("KERNEL_OK")
</pallas_src>

<mosaic_0001>
module attributes {stable_mosaic.version = 11 : i64} {
  func.func @_classifier_kernel_single_k(%arg0: i32, %arg1: i32, %arg2: memref<8x128xf32, #tpu.memory_space<vmem>>, %arg3: memref<128x128xf32, #tpu.memory_space<vmem>>, %arg4: memref<1x128xf32, #tpu.memory_space<vmem>>, %arg5: memref<8x128xf32, #tpu.memory_space<vmem>>) attributes {dimension_semantics = [#tpu.dimension_semantics<parallel>, #tpu.dimension_semantics<parallel>], iteration_bounds = array<i64: 1, 1>, scalar_prefetch = 0 : i64, scratch_operands = 0 : i64, tpu.core_type = #tpu.core_type<tc>, window_params = [{transform_indices = @transform_0, window_bounds = array<i64: 8, 128>}, {transform_indices = @transform_1, window_bounds = array<i64: 128, 128>}, {transform_indices = @transform_2, window_bounds = array<i64: 1, 128>}, {transform_indices = @transform_3, window_bounds = array<i64: 8, 128>}]} {
    %c0 = arith.constant 0 : index
    %c0_0 = arith.constant 0 : index
    %0 = vector.load %arg2[%c0, %c0_0] : memref<8x128xf32, #tpu.memory_space<vmem>>, vector<8x128xf32>
    %c0_1 = arith.constant 0 : index
    %c0_2 = arith.constant 0 : index
    %1 = vector.load %arg3[%c0_1, %c0_2] : memref<128x128xf32, #tpu.memory_space<vmem>>, vector<128x128xf32>
    %cst = arith.constant dense<0.000000e+00> : vector<8x128xf32>
    %2 = tpu.matmul %0, %1, %cst {dimension_numbers = #tpu.dot_dimension_numbers<[1], [1], [0], [0], [0, 0, 1, 0], [], []>} : vector<8x128xf32>, vector<128x128xf32>, vector<8x128xf32> -> vector<8x128xf32>
    %c0_3 = arith.constant 0 : index
    %c0_4 = arith.constant 0 : index
    %3 = vector.load %arg4[%c0_3, %c0_4] : memref<1x128xf32, #tpu.memory_space<vmem>>, vector<1x128xf32>
    %4 = vector.broadcast %3 : vector<1x128xf32> to vector<8x128xf32>
    %5 = arith.addf %2, %4 : vector<8x128xf32>
    %c0_5 = arith.constant 0 : index
    %c0_6 = arith.constant 0 : index
    %6 = vector.load %arg5[%c0_5, %c0_6] : memref<8x128xf32, #tpu.memory_space<vmem>>, vector<8x128xf32>
    tpu.vector_store %arg5[%c0_5, %c0_6], %5 {strides = array<i32>} : memref<8x128xf32, #tpu.memory_space<vmem>>, vector<8x128xf32>,
    return
  }
  func.func @transform_0(%arg0: i32, %arg1: i32) -> (i32, i32) {
    %c0_i32 = arith.constant 0 : i32
    %c0_i32_0 = arith.constant 0 : i32
    return %arg1, %c0_i32 : i32, i32
  }
  func.func @transform_1(%arg0: i32, %arg1: i32) -> (i32, i32) {
    %c0_i32 = arith.constant 0 : i32
    %c0_i32_0 = arith.constant 0 : i32
    return %arg0, %c0_i32 : i32, i32
  }
  func.func @transform_2(%arg0: i32, %arg1: i32) -> (i32, i32) {
    %c0_i32 = arith.constant 0 : i32
    %c0_i32_0 = arith.constant 0 : i32
    return %c0_i32, %arg0 : i32, i32
  }
  func.func @transform_3(%arg0: i32, %arg1: i32) -> (i32, i32) {
    %c0_i32 = arith.constant 0 : i32
    return %arg1, %arg0 : i32, i32
  }
}

</mosaic_0001>

<llo_original>
// kernel: tpu_custom_call.1
$region0: #{tpu_custom_call.1}
  #allocation0 [shape = 'u32[]', space=smem, size = 0x4, offset = 0x4, fixed_abs, tag = 'smem constant byte address 0x4 - core index']
  #allocation1 [shape = 'u32[72,128]{1,0:T(1,128)}', space=vmem, size = 0x9000, scoped, tag = 'internal scratch']
  %s0 = inlined_call_operand.hbm [shape: f32[8,128], index: 0, kind: input, shape index: {}]
  %s1 = inlined_call_operand.hbm [shape: f32[128,128], index: 1, kind: input, shape index: {}]
  %s2 = inlined_call_operand.vmem [shape: f32[1,128], index: 2, kind: input, shape index: {}]
  %s3 = inlined_call_operand.hbm [shape: f32[8,128], index: 3, kind: output, shape index: {}]
  %s4 = sld [smem:[#allocation0]]
  $region30: #{tpu_custom_call.1} parent=0
    _
  %s6 = ssub.s32 1, %s4
  %s7 = scalar_select 0, %s6, %s4
  $region1: #{tpu_custom_call.1} parent=0
    #allocation2 [shape = 'u8[4096]{0}', space=vmem, size = 0x1000, scoped, tag = 'input window, operand 0, single buffered']
    #allocation3 [shape = 's32[1]{0}', space=sflag, size = 0x4, scoped, tag = 'scoped memory for tpu_custom_call.1']
    #allocation4 [shape = 's32[1]{0}', space=sflag, size = 0x4, scoped, tag = 'scoped memory for tpu_custom_call.1']
    #allocation5 [shape = 'u8[65536]{0}', space=vmem, size = 0x10000, scoped, tag = 'input window, operand 1, single buffered']
    #allocation6 [shape = 's32[1]{0}', space=sflag, size = 0x4, scoped, tag = 'scoped memory for tpu_custom_call.1']
    #allocation7 [shape = 'u8[4096]{0}', space=vmem, size = 0x1000, scoped, tag = 'output window, operand 0, single buffered']
    %8 = vsyncpa [#allocation3], 0
    %9 = vsyncpa [#allocation6], 0
    %10 = vsyncpa [#allocation4], 0
    // Predicated region
    $region2: #{tpu_custom_call.1} parent=1 // pred_check
      _
    $region3: #{tpu_custom_call.1} parent=1 // pred_check_branch
      %12 = sbr.rel (0) target = $region5
    $region4: #{tpu_custom_call.1} parent=1 // pred_region
      %14 = vsyncadd [#allocation3], 0
      %s16 = sshll.u32 %s0, 4
      %s17 = int_to_ptr.hbm [resolvable:$true] %s16
      %s18 = sshll.u32 [#allocation2], 4
      %s19 = int_to_ptr.vmem [resolvable:$true] %s18
      %21 = dma.hbm_to_vmem [thread:$0]  %s17, 128, %s19, [#allocation3]
    $region5: #{tpu_custom_call.1} parent=1 // pred_fallthru
      _
    // Predicated region
    $region6: #{tpu_custom_call.1} parent=1 // pred_check
      _
    $region7: #{tpu_custom_call.1} parent=1 // pred_check_branch
      %23 = sbr.rel (0) target = $region9
    $region8: #{tpu_custom_call.1} parent=1 // pred_region
      %25 = vsyncadd [#allocation6], 0
      %s26 = sshll.u32 %s1, 4
      %s27 = int_to_ptr.hbm [resolvable:$true] %s26
      %s28 = sshll.u32 [#allocation5], 4
      %s29 = int_to_ptr.vmem [resolvable:$true] %s28
      %34 = dma.hbm_to_vmem [thread:$0]  %s27, 2048, %s29, [#allocation6], 128, 128, 8
    $region9: #{tpu_custom_call.1} parent=1 // pred_fallthru
      _
    // Predicated region
    $region10: #{tpu_custom_call.1} parent=1 // pred_check
      _
    $region11: #{tpu_custom_call.1} parent=1 // pred_check_branch
      %36 = sbr.rel (0) target = $region13
    $region12: #{tpu_custom_call.1} parent=1 // pred_region
      _
    $region13: #{tpu_custom_call.1} parent=1 // pred_fallthru
      _
    // Predicated region
    $region14: #{tpu_custom_call.1} parent=1 // pred_check
      _
    $region15: #{tpu_custom_call.1} parent=1 // pred_check_branch
      %38 = sbr.rel (0) target = $region17
    $region16: #{tpu_custom_call.1} parent=1 // pred_region
      %40 = dma.done [#allocation3], 128
    $region17: #{tpu_custom_call.1} parent=1 // pred_fallthru
      _
    // Predicated region
    $region18: #{tpu_custom_call.1} parent=1 // pred_check
      _
    $region19: #{tpu_custom_call.1} parent=1 // pred_check_branch
      %42 = sbr.rel (0) target = $region21
    $region20: #{tpu_custom_call.1} parent=1 // pred_region
      %44 = dma.done [#allocation6], 2048
    $region21: #{tpu_custom_call.1} parent=1 // pred_fallthru
      _
    %v45 = vld [vmem:[#allocation2] sm:$0xff]
    %v46 = vld [vmem:[#allocation5] sm:$0xff]
    %v47 = vld [vmem:[#allocation5 + $0x8] sm:$0xff]
    %v48 = vld [vmem:[#allocation5 + $0x10] sm:$0xff]
    %v49 = vld [vmem:[#allocation5 + $0x18] sm:$0xff]
    %v50 = vld [vmem:[#allocation5 + $0x20] sm:$0xff]
    %v51 = vld [vmem:[#allocation5 + $0x28] sm:$0xff]
    %v52 = vld [vmem:[#allocation5 + $0x30] sm:$0xff]
    %v53 = vld [vmem:[#allocation5 + $0x38] sm:$0xff]
    %v54 = vld [vmem:[#allocation5 + $0x40] sm:$0xff]
    %v55 = vld [vmem:[#allocation5 + $0x48] sm:$0xff]
    %v56 = vld [vmem:[#allocation5 + $0x50] sm:$0xff]
    %v57 = vld [vmem:[#allocation5 + $0x58] sm:$0xff]
    %v58 = vld [vmem:[#allocation5 + $0x60] sm:$0xff]
    %v59 = vld [vmem:[#allocation5 + $0x68] sm:$0xff]
    %v60 = vld [vmem:[#allocation5 + $0x70] sm:$0xff]
    %v61 = vld [vmem:[#allocation5 + $0x78] sm:$0xff]
    %v62 = vld [vmem:[%s2] sm:$0x1]
    %v64 = vperm.slane %v62, 0
    %66 = vmatpush.xpose.msra.mxu0 %v61
    %67 = vmatpush.xpose.msra.mxu0 %v60
    %68 = vmatpush.xpose.msra.mxu0 %v59
    %69 = vmatpush.xpose.msra.mxu0 %v58
    %70 = vmatpush.xpose.msra.mxu0 %v57
    %71 = vmatpush.xpose.msra.mxu0 %v56
    %72 = vmatpush.xpose.msra.mxu0 %v55
    %73 = vmatpush.xpose.msra.mxu0 %v54
    %74 = vmatpush.xpose.msra.mxu0 %v53
    %75 = vmatpush.xpose.msra.mxu0 %v52
    %76 = vmatpush.xpose.msra.mxu0 %v51
    %77 = vmatpush.xpose.msra.mxu0 %v50
    %78 = vmatpush.xpose.msra.mxu0 %v49
    %79 = vmatpush.xpose.msra.mxu0 %v48
    %80 = vmatpush.xpose.msra.mxu0 %v47
    %81 = vmatpush.xpose.msra.mxu0 %v46
    %82 = vmatmul.f32.gmra.mxu0 %v45
    %v83 = vpop.f32.mrf.mxu0
    %v84 = vadd.f32 %v64, %v83
    %85 = vdwg.mxu0
    %86 = vst [vmem:[#allocation7] sm:$0xff] %v84
    // Predicated region
    $region22: #{tpu_custom_call.1} parent=1 // pred_check
      _
    $region23: #{tpu_custom_call.1} parent=1 // pred_check_branch
      %88 = sbr.rel (0) target = $region25
    $region24: #{tpu_custom_call.1} parent=1 // pred_region
      %90 = vsyncadd [#allocation4], 0
      %s92 = sshll.u32 [#allocation7], 4
      %s93 = int_to_ptr.vmem [resolvable:$true] %s92
      %s94 = sshll.u32 %s3, 4
      %s95 = int_to_ptr.hbm [resolvable:$true] %s94
      %97 = dma.vmem_to_hbm [thread:$0]  %s93, 128, %s95, [#allocation4]
    $region25: #{tpu_custom_call.1} parent=1 // pred_fallthru
      _
    // Predicated region
    $region26: #{tpu_custom_call.1} parent=1 // pred_check
      _
    $region27: #{tpu_custom_call.1} parent=1 // pred_check_branch
      %99 = sbr.rel (0) target = $region29
    $region28: #{tpu_custom_call.1} parent=1 // pred_region
      %101 = dma.done [#allocation4], 128
    $region29: #{tpu_custom_call.1} parent=1 // pred_fallthru
      _
    %102 = vsyncpa [#allocation3], 1
    %103 = vsyncpa [#allocation6], 1
    %104 = vsyncpa [#allocation4], 1

</llo_original>
